<compile_context>
chip_gen: v6e
topology: v6e:2x2x1
jax: 0.10.0
libtpu: 0.0.40
codegen_flags: <defaults>
</compile_context>

<pallas_src>
import jax
import jax.numpy as jnp
from jax.experimental import pallas as pl
from jax.experimental.pallas import tpu as pltpu

_LANE = 128
_SUBLANE = 16          # sublane multiple that is safe for both f32 and bf16 tiles
_NEG_INF = -1e30       # padded-label bias -> exp(-1e30 - m) == 0 in the f32 epilogue


def _round_up(x: int, m: int) -> int:
    return (x + m - 1) // m * m


def _mlp_kernel(x_ref, w1_ref, b1_ref, w2_ref, b2_ref, out_ref):
    # x_ref:  [TB, D]  (input dtype)      w1_ref: [D, H]  (compute dtype)
    # b1_ref: [1, H]   (f32)              w2_ref: [H, L]  (compute dtype)
    # b2_ref: [1, L]   (f32)              out_ref:[TB, L] (out dtype)
    # H, L are lane multiples of 128; D is the real feature dim (full-dim block)
    # and the last batch tile may be ragged (OOB rows are garbage and clipped).

    # Cast the streamed activations to the MXU operand dtype in-kernel (VPU op,
    # free under the HBM-bound roofline; avoids an extra wrapper-side HBM pass).
    x = x_ref[...].astype(w1_ref.dtype)

    # Layer 1: MXU matmul with f32 accumulation; bias add + tanh in f32 (VPU/EUP).
    h = jnp.dot(x, w1_ref[...], preferred_element_type=jnp.float32) + b1_ref[...]
    h = jnp.tanh(h)

    # Layer 2: cast activations to the matmul operand dtype, accumulate in f32.
    logits = jnp.dot(h.astype(w2_ref.dtype), w2_ref[...],
                     preferred_element_type=jnp.float32) + b2_ref[...]

    # Numerically stable softmax over the lane-padded label axis (kept in f32;
    # the -1e30 padded-bias trick requires the f32 epilogue).
    m = jnp.max(logits, axis=-1, keepdims=True)
    e = jnp.exp(logits - m)
    denom = jnp.sum(e, axis=-1, keepdims=True)
    inv = pl.reciprocal(denom, approx=True)      # EUP vrcp (frees the VALU divide)
    inv = inv * (2.0 - denom * inv)              # one Newton step -> ~f32 accuracy
    out_ref[...] = (e * inv).astype(out_ref.dtype)


def mlp_forward(images, W1, b1, W2, b2, *,
                compute_dtype=jnp.bfloat16,   # MXU operand dtype (f32 accumulation)
                out_dtype=jnp.float32,        # bfloat16 halves output writeback bytes
                block_b=None):
    """images: [B, C, H, W] -> softmax probabilities [B, LABELS] in out_dtype."""
    B = images.shape[0]
    d_in, hidden = W1.shape
    labels = W2.shape[1]

    h_pad = _round_up(hidden, _LANE)
    l_pad = _round_up(labels, _LANE)

    # x: just a (free) contiguous reshape -- no pad, no dtype cast in HBM.
    x = images.reshape(B, d_in)

    # Weights/biases are tiny: pad hidden/label columns to lane multiples and
    # cast once here.  Zero-padded W1 columns / W2 rows contribute exactly 0;
    # the -1e30 bias on padded label columns drives their softmax term to 0.
    w1 = jnp.pad(W1, ((0, 0), (0, h_pad - hidden))).astype(compute_dtype)
    w2 = jnp.pad(W2, ((0, h_pad - hidden), (0, l_pad - labels))).astype(compute_dtype)
    b1p = jnp.pad(b1.astype(jnp.float32), (0, h_pad - hidden)).reshape(1, h_pad)
    b2p = jnp.pad(b2.astype(jnp.float32), (0, l_pad - labels),
                  constant_values=_NEG_INF).reshape(1, l_pad)

    # Batch tile: large enough to amortize the ~0.35us per-grid-step overhead,
    # but never fewer than two tiles when B allows it (v7x has 2 TensorCores).
    if block_b is None:
        block_b = 2048
        if B > 2 * _SUBLANE:
            block_b = min(block_b, _round_up(pl.cdiv(B, 2), _SUBLANE))
    if block_b >= B:
        block_b = B                              # single full-dim block
    else:
        block_b = _round_up(block_b, _SUBLANE)   # sublane-aligned streamed tile
    grid = (pl.cdiv(B, block_b),)                # ragged last tile is clipped

    x_bytes = jnp.dtype(x.dtype).itemsize
    c_bytes = jnp.dtype(compute_dtype).itemsize
    o_bytes = jnp.dtype(out_dtype).itemsize
    cost = pl.CostEstimate(
        flops=2 * B * (d_in * h_pad + h_pad * l_pad),
        transcendentals=B * (h_pad + l_pad),
        bytes_accessed=B * d_in * x_bytes
                       + (d_in * h_pad + h_pad * l_pad) * c_bytes
                       + (h_pad + l_pad) * 4
                       + B * l_pad * o_bytes,
    )

    out = pl.pallas_call(
        _mlp_kernel,
        out_shape=jax.ShapeDtypeStruct((B, l_pad), out_dtype),
        grid=grid,
        in_specs=[
            pl.BlockSpec((block_b, d_in), lambda i: (i, 0)),   # streamed batch tile
            pl.BlockSpec((d_in, h_pad), lambda i: (0, 0)),     # resident weights
            pl.BlockSpec((1, h_pad), lambda i: (0, 0)),
            pl.BlockSpec((h_pad, l_pad), lambda i: (0, 0)),
            pl.BlockSpec((1, l_pad), lambda i: (0, 0)),
        ],
        out_specs=pl.BlockSpec((block_b, l_pad), lambda i: (i, 0)),  # lane-dense
        compiler_params=pltpu.CompilerParams(
            dimension_semantics=("parallel",),        # shard batch tiles across TCs
            vmem_limit_bytes=64 * 1024 * 1024),
        cost_estimate=cost,
    )(x, w1, b1p, w2, b2p)

    # Drop the lane-padding columns (no batch padding was ever materialized).
    return out[:, :labels]


def _ref_forward(images, W1, b1, W2, b2, dtype=jnp.float32):
    xf = images.reshape(images.shape[0], -1)
    h = jnp.tanh(jnp.dot(xf.astype(dtype), W1.astype(dtype),
                         preferred_element_type=jnp.float32) + b1)
    logits = jnp.dot(h.astype(dtype), W2.astype(dtype),
                     preferred_element_type=jnp.float32) + b2
    return jax.nn.softmax(logits, axis=-1)


if __name__ == "__main__":
    # Small synthetic MNIST-like shapes.
    B, C, H, W = 2, 1, 8, 8          # flattened input dim = 64
    HIDDEN = 32
    LABELS = 10

    key = jax.random.PRNGKey(0)
    k_x, k_w1, k_w2, k_x2 = jax.random.split(key, 4)

    images = jax.random.uniform(k_x, (B, C, H, W), dtype=jnp.float32)
    W1 = jax.random.normal(k_w1, (C * H * W, HIDDEN), dtype=jnp.float32) * 0.1
    b1 = jnp.zeros((HIDDEN,), dtype=jnp.float32)
    W2 = jax.random.normal(k_w2, (HIDDEN, LABELS), dtype=jnp.float32) * 0.1
    b2 = jnp.zeros((LABELS,), dtype=jnp.float32)

    # --- exact f32 path, tiny batch (single full-dim block, grid=(1,)) ---
    probs = jax.block_until_ready(
        mlp_forward(images, W1, b1, W2, b2, compute_dtype=jnp.float32))
    ref = _ref_forward(images, W1, b1, W2, b2)
    assert probs.shape == (B, LABELS)
    assert jnp.allclose(probs, ref, atol=1e-5), "f32 mismatch vs reference"
    assert jnp.allclose(jnp.sum(probs, axis=-1), 1.0, atol=1e-5)

    # --- f32 path, explicit tiling with a ragged last batch tile (grid=(3,)) ---
    B2 = 300
    images2 = jax.random.uniform(k_x2, (B2, C, H, W), dtype=jnp.float32)
    ref2 = _ref_forward(images2, W1, b1, W2, b2)
    probs2 = jax.block_until_ready(
        mlp_forward(images2, W1, b1, W2, b2, compute_dtype=jnp.float32, block_b=128))
    assert probs2.shape == (B2, LABELS)
    assert jnp.allclose(probs2, ref2, atol=1e-5), "tiled f32 mismatch vs reference"
    assert jnp.allclose(jnp.sum(probs2, axis=-1), 1.0, atol=1e-5)

    # --- default path: bf16 MXU operands, f32 epilogue, auto >=2-tile grid ---
    probs_bf16 = jax.block_until_ready(mlp_forward(images2, W1, b1, W2, b2))
    ref_bf16 = _ref_forward(images2, W1, b1, W2, b2, dtype=jnp.bfloat16)
    assert probs_bf16.shape == (B2, LABELS)
    assert jnp.allclose(probs_bf16, ref_bf16, atol=2e-3), "bf16 mismatch vs reference"
    assert jnp.allclose(jnp.sum(probs_bf16, axis=-1), 1.0, atol=1e-3)

    # --- bf16 output writeback (halves store bytes, keeps the lane-dense block) ---
    probs_bf16_out = jax.block_until_ready(
        mlp_forward(images2, W1, b1, W2, b2, out_dtype=jnp.bfloat16))
    assert probs_bf16_out.dtype == jnp.bfloat16
    assert jnp.allclose(probs_bf16_out.astype(jnp.float32), ref_bf16, atol=1e-2)
    assert jnp.allclose(jnp.sum(probs_bf16_out.astype(jnp.float32), axis=-1),
                        1.0, atol=2e-2)

    print("KERNEL_OK")
</pallas_src>

<mosaic_0001>
module attributes {stable_mosaic.version = 11 : i64} {
  func.func @_mlp_kernel(%arg0: i32, %arg1: memref<2x64xf32, #tpu.memory_space<vmem>>, %arg2: memref<64x128xf32, #tpu.memory_space<vmem>>, %arg3: memref<1x128xf32, #tpu.memory_space<vmem>>, %arg4: memref<128x128xf32, #tpu.memory_space<vmem>>, %arg5: memref<1x128xf32, #tpu.memory_space<vmem>>, %arg6: memref<2x128xf32, #tpu.memory_space<vmem>>) attributes {dimension_semantics = [#tpu.dimension_semantics<parallel>], iteration_bounds = array<i64: 1>, scalar_prefetch = 0 : i64, scratch_operands = 0 : i64, tpu.core_type = #tpu.core_type<tc>, window_params = [{transform_indices = @transform_0, window_bounds = array<i64: 2, 64>}, {pipeline_mode = #tpu.pipeline_mode<synchronous>, transform_indices = @transform_1, window_bounds = array<i64: 64, 128>}, {pipeline_mode = #tpu.pipeline_mode<synchronous>, transform_indices = @transform_2, window_bounds = array<i64: 1, 128>}, {pipeline_mode = #tpu.pipeline_mode<synchronous>, transform_indices = @transform_3, window_bounds = array<i64: 128, 128>}, {pipeline_mode = #tpu.pipeline_mode<synchronous>, transform_indices = @transform_4, window_bounds = array<i64: 1, 128>}, {transform_indices = @transform_5, window_bounds = array<i64: 2, 128>}]} {
    %c0 = arith.constant 0 : index
    %c0_0 = arith.constant 0 : index
    %0 = vector.load %arg1[%c0, %c0_0] : memref<2x64xf32, #tpu.memory_space<vmem>>, vector<2x64xf32>
    %c0_1 = arith.constant 0 : index
    %c0_2 = arith.constant 0 : index
    %1 = vector.load %arg2[%c0_1, %c0_2] : memref<64x128xf32, #tpu.memory_space<vmem>>, vector<64x128xf32>
    %cst = arith.constant dense<0.000000e+00> : vector<2x128xf32>
    %2 = tpu.matmul %0, %1, %cst {dimension_numbers = #tpu.dot_dimension_numbers<[1], [0], [0], [1], [0, 0, 1, 1], [], []>} : vector<2x64xf32>, vector<64x128xf32>, vector<2x128xf32> -> vector<2x128xf32>
    %c0_3 = arith.constant 0 : index
    %c0_4 = arith.constant 0 : index
    %3 = vector.load %arg3[%c0_3, %c0_4] : memref<1x128xf32, #tpu.memory_space<vmem>>, vector<1x128xf32>
    %4 = vector.broadcast %3 : vector<1x128xf32> to vector<2x128xf32>
    %5 = arith.addf %2, %4 : vector<2x128xf32>
    %6 = math.tanh %5 : vector<2x128xf32>
    %c0_5 = arith.constant 0 : index
    %c0_6 = arith.constant 0 : index
    %7 = vector.load %arg4[%c0_5, %c0_6] : memref<128x128xf32, #tpu.memory_space<vmem>>, vector<128x128xf32>
    %cst_7 = arith.constant dense<0.000000e+00> : vector<2x128xf32>
    %8 = tpu.matmul %6, %7, %cst_7 {dimension_numbers = #tpu.dot_dimension_numbers<[1], [0], [0], [1], [0, 0, 1, 1], [], []>} : vector<2x128xf32>, vector<128x128xf32>, vector<2x128xf32> -> vector<2x128xf32>
    %c0_8 = arith.constant 0 : index
    %c0_9 = arith.constant 0 : index
    %9 = vector.load %arg5[%c0_8, %c0_9] : memref<1x128xf32, #tpu.memory_space<vmem>>, vector<1x128xf32>
    %10 = vector.broadcast %9 : vector<1x128xf32> to vector<2x128xf32>
    %11 = arith.addf %8, %10 : vector<2x128xf32>
    %cst_10 = arith.constant dense<0xFF800000> : vector<2xf32>
    %12 = vector.multi_reduction <maximumf>, %11, %cst_10 [1] : vector<2x128xf32> to vector<2xf32>
    %13 = vector.shape_cast %12 : vector<2xf32> to vector<2x1xf32>
    %14 = vector.broadcast %13 : vector<2x1xf32> to vector<2x128xf32>
    %15 = arith.subf %11, %14 : vector<2x128xf32>
    %16 = math.exp %15 : vector<2x128xf32>
    %cst_11 = arith.constant dense<0.000000e+00> : vector<2xf32>
    %17 = vector.multi_reduction <add>, %16, %cst_11 [1] : vector<2x128xf32> to vector<2xf32>
    %18 = vector.shape_cast %17 : vector<2xf32> to vector<2x1xf32>
    %19 = tpu.reciprocal %18 {approx = true} : vector<2x1xf32> -> vector<2x1xf32>
    %20 = arith.mulf %18, %19 : vector<2x1xf32>
    %cst_12 = arith.constant 2.000000e+00 : f32
    %21 = vector.broadcast %cst_12 : f32 to vector<2x1xf32>
    %22 = arith.subf %21, %20 : vector<2x1xf32>
    %23 = arith.mulf %19, %22 : vector<2x1xf32>
    %24 = vector.broadcast %23 : vector<2x1xf32> to vector<2x128xf32>
    %25 = arith.mulf %16, %24 : vector<2x128xf32>
    %c0_13 = arith.constant 0 : index
    %c0_14 = arith.constant 0 : index
    %26 = vector.load %arg6[%c0_13, %c0_14] : memref<2x128xf32, #tpu.memory_space<vmem>>, vector<2x128xf32>
    tpu.vector_store %arg6[%c0_13, %c0_14], %25 {strides = array<i32>} : memref<2x128xf32, #tpu.memory_space<vmem>>, vector<2x128xf32>,
    return
  }
  func.func @transform_0(%arg0: i32) -> (i32, i32) {
    %c0_i32 = arith.constant 0 : i32
    %c0_i32_0 = arith.constant 0 : i32
    return %arg0, %c0_i32 : i32, i32
  }
  func.func @transform_1(%arg0: i32) -> (i32, i32) {
    %c0_i32 = arith.constant 0 : i32
    %c0_i32_0 = arith.constant 0 : i32
    %c0_i32_1 = arith.constant 0 : i32
    return %c0_i32, %c0_i32_0 : i32, i32
  }
  func.func @transform_2(%arg0: i32) -> (i32, i32) {
    %c0_i32 = arith.constant 0 : i32
    %c0_i32_0 = arith.constant 0 : i32
    %c0_i32_1 = arith.constant 0 : i32
    return %c0_i32, %c0_i32_0 : i32, i32
  }
  func.func @transform_3(%arg0: i32) -> (i32, i32) {
    %c0_i32 = arith.constant 0 : i32
    %c0_i32_0 = arith.constant 0 : i32
    %c0_i32_1 = arith.constant 0 : i32
    return %c0_i32, %c0_i32_0 : i32, i32
  }
  func.func @transform_4(%arg0: i32) -> (i32, i32) {
    %c0_i32 = arith.constant 0 : i32
    %c0_i32_0 = arith.constant 0 : i32
    %c0_i32_1 = arith.constant 0 : i32
    return %c0_i32, %c0_i32_0 : i32, i32
  }
  func.func @transform_5(%arg0: i32) -> (i32, i32) {
    %c0_i32 = arith.constant 0 : i32
    %c0_i32_0 = arith.constant 0 : i32
    return %arg0, %c0_i32 : i32, i32
  }
}

</mosaic_0001>

<llo_original>
// kernel: tpu_custom_call.1
$region0: #{tpu_custom_call.1}
  #allocation0 [shape = 'u32[]', space=smem, size = 0x4, offset = 0x4, fixed_abs, tag = 'smem constant byte address 0x4 - core index']
  #allocation1 [shape = 'u32[144,128]{1,0:T(1,128)}', space=vmem, size = 0x12000, scoped, tag = 'internal scratch']
  %s0 = inlined_call_operand.hbm [shape: f32[2,64], index: 0, kind: input, shape index: {}]
  %s1 = inlined_call_operand.hbm [shape: f32[64,128], index: 1, kind: input, shape index: {}]
  %s2 = inlined_call_operand.vmem [shape: f32[1,128], index: 2, kind: input, shape index: {}]
  %s3 = inlined_call_operand.hbm [shape: f32[128,128], index: 3, kind: input, shape index: {}]
  %s4 = inlined_call_operand.vmem [shape: f32[1,128], index: 4, kind: input, shape index: {}]
  %s5 = inlined_call_operand.hbm [shape: f32[2,128], index: 5, kind: output, shape index: {}]
  %s6 = sld [smem:[#allocation0]]
  $region42: #{tpu_custom_call.1} parent=0
    _
  %s8 = ssub.s32 1, %s6
  %s9 = scalar_select 0, %s8, %s6
  $region1: #{tpu_custom_call.1} parent=0
    #allocation2 [shape = 'u8[1024]{0}', space=vmem, size = 0x400, scoped, tag = 'input window, operand 0, single buffered']
    #allocation3 [shape = 's32[1]{0}', space=sflag, size = 0x4, scoped, tag = 'scoped memory for tpu_custom_call.1']
    #allocation4 [shape = 's32[1]{0}', space=sflag, size = 0x4, scoped, tag = 'scoped memory for tpu_custom_call.1']
    #allocation5 [shape = 'u8[32768]{0}', space=vmem, size = 0x8000, scoped, tag = 'input window, operand 1, single buffered']
    #allocation6 [shape = 's32[1]{0}', space=sflag, size = 0x4, scoped, tag = 'scoped memory for tpu_custom_call.1']
    #allocation7 [shape = 'u8[65536]{0}', space=vmem, size = 0x10000, scoped, tag = 'input window, operand 3, single buffered']
    #allocation8 [shape = 'u8[1024]{0}', space=vmem, size = 0x400, scoped, tag = 'output window, operand 0, single buffered']
    %10 = vsyncpa [#allocation3], 0
    %11 = vsyncpa [#allocation6], 0
    %12 = vsyncpa [#allocation4], 0
    // Predicated region
    $region2: #{tpu_custom_call.1} parent=1 // pred_check
      _
    $region3: #{tpu_custom_call.1} parent=1 // pred_check_branch
      %14 = sbr.rel (0) target = $region5
    $region4: #{tpu_custom_call.1} parent=1 // pred_region
      %s16 = ssub.s32 32, 32
      %17 = vsyncadd [#allocation3], %s16
      %s19 = sshll.u32 [#allocation2], 4
      %s20 = int_to_ptr.vmem [resolvable:$true] %s19
      %22 = dma.hbm_to_vmem [thread:$0]  %s0, 32, %s20, [#allocation3]
    $region5: #{tpu_custom_call.1} parent=1 // pred_fallthru
      _
    // Predicated region
    $region6: #{tpu_custom_call.1} parent=1 // pred_check
      _
    $region7: #{tpu_custom_call.1} parent=1 // pred_check_branch
      %24 = sbr.rel (0) target = $region9
    $region8: #{tpu_custom_call.1} parent=1 // pred_region
      %s26 = ssub.s32 1024, 1024
      %27 = vsyncadd [#allocation6], %s26
      %s28 = sshll.u32 [#allocation5], 4
      %s29 = int_to_ptr.vmem [resolvable:$true] %s28
      %34 = dma.hbm_to_vmem [thread:$0]  %s1, 1024, %s29, [#allocation6], 128, 128, 8
    $region9: #{tpu_custom_call.1} parent=1 // pred_fallthru
      _
    // Predicated region
    $region10: #{tpu_custom_call.1} parent=1 // pred_check
      _
    $region11: #{tpu_custom_call.1} parent=1 // pred_check_branch
      %36 = sbr.rel (0) target = $region13
    $region12: #{tpu_custom_call.1} parent=1 // pred_region
      _
    $region13: #{tpu_custom_call.1} parent=1 // pred_fallthru
      _
    // Predicated region
    $region14: #{tpu_custom_call.1} parent=1 // pred_check
      _
    $region15: #{tpu_custom_call.1} parent=1 // pred_check_branch
      %38 = sbr.rel (0) target = $region17
    $region16: #{tpu_custom_call.1} parent=1 // pred_region
      %s40 = ssub.s32 2048, 2048
      %41 = vsyncadd [#allocation6], %s40
      %s42 = sshll.u32 [#allocation7], 4
      %s43 = int_to_ptr.vmem [resolvable:$true] %s42
      %48 = dma.hbm_to_vmem [thread:$0]  %s3, 2048, %s43, [#allocation6], 128, 128, 8
    $region17: #{tpu_custom_call.1} parent=1 // pred_fallthru
      _
    // Predicated region
    $region18: #{tpu_custom_call.1} parent=1 // pred_check
      _
    $region19: #{tpu_custom_call.1} parent=1 // pred_check_branch
      %50 = sbr.rel (0) target = $region21
    $region20: #{tpu_custom_call.1} parent=1 // pred_region
      _
    $region21: #{tpu_custom_call.1} parent=1 // pred_fallthru
      _
    // Predicated region
    $region22: #{tpu_custom_call.1} parent=1 // pred_check
      _
    $region23: #{tpu_custom_call.1} parent=1 // pred_check_branch
      %52 = sbr.rel (0) target = $region25
    $region24: #{tpu_custom_call.1} parent=1 // pred_region
      %53 = dma.done [#allocation3], 32
    $region25: #{tpu_custom_call.1} parent=1 // pred_fallthru
      _
    // Predicated region
    $region26: #{tpu_custom_call.1} parent=1 // pred_check
      _
    $region27: #{tpu_custom_call.1} parent=1 // pred_check_branch
      %55 = sbr.rel (0) target = $region29
    $region28: #{tpu_custom_call.1} parent=1 // pred_region
      %56 = dma.done [#allocation6], 1024
    $region29: #{tpu_custom_call.1} parent=1 // pred_fallthru
      _
    // Predicated region
    $region30: #{tpu_custom_call.1} parent=1 // pred_check
      _
    $region31: #{tpu_custom_call.1} parent=1 // pred_check_branch
      %58 = sbr.rel (0) target = $region33
    $region32: #{tpu_custom_call.1} parent=1 // pred_region
      %59 = dma.done [#allocation6], 2048
    $region33: #{tpu_custom_call.1} parent=1 // pred_fallthru
      _
    %v60 = vld [vmem:[#allocation2] sm:$0x3]
    %v61 = vld [vmem:[#allocation5] sm:$0xff]
    %v62 = vld [vmem:[#allocation5 + $0x8] sm:$0xff]
    %v63 = vld [vmem:[#allocation5 + $0x10] sm:$0xff]
    %v64 = vld [vmem:[#allocation5 + $0x18] sm:$0xff]
    %v65 = vld [vmem:[#allocation5 + $0x20] sm:$0xff]
    %v66 = vld [vmem:[#allocation5 + $0x28] sm:$0xff]
    %v67 = vld [vmem:[#allocation5 + $0x30] sm:$0xff]
    %v68 = vld [vmem:[#allocation5 + $0x38] sm:$0xff]
    %v69 = vld [vmem:[%s2] sm:$0x1]
    %v71 = vlaneseq
    %v72 = vshrl.u32 %v71, 7
    %v73 = vsub.s32 0, %v72
    %v74 = vrot.slane %v69, %v73
    %vm76 = vcmask 523264
    %v78 = vsel %vm76, %v60, 0
    %80 = vmatprep.subr.mxu0 0.0
    %81 = vmatpush1.msra.mxu0 0.0
    %82 = vmatprep.subr.mxu0 0.0
    %83 = vmatpush1.msra.mxu0 0.0
    %84 = vmatprep.subr.mxu0 0.0
    %85 = vmatpush1.msra.mxu0 0.0
    %86 = vmatprep.subr.mxu0 0.0
    %87 = vmatpush1.msra.mxu0 0.0
    %88 = vmatprep.subr.mxu0 0.0
    %89 = vmatpush1.msra.mxu0 0.0
    %90 = vmatprep.subr.mxu0 0.0
    %91 = vmatpush1.msra.mxu0 0.0
    %92 = vmatprep.subr.mxu0 0.0
    %93 = vmatpush1.msra.mxu0 0.0
    %94 = vmatprep.subr.mxu0 0.0
    %95 = vmatpush1.msra.mxu0 0.0
    %96 = vmatprep.subr.mxu0 0.0
    %97 = vmatpush1.msra.mxu0 %v68
    %98 = vmatprep.subr.mxu0 0.0
    %99 = vmatpush1.msra.mxu0 %v67
    %100 = vmatprep.subr.mxu0 0.0
    %101 = vmatpush1.msra.mxu0 %v66
    %102 = vmatprep.subr.mxu0 0.0
    %103 = vmatpush1.msra.mxu0 %v65
    %104 = vmatprep.subr.mxu0 0.0
    %105 = vmatpush1.msra.mxu0 %v64
    %106 = vmatprep.subr.mxu0 0.0
    %107 = vmatpush1.msra.mxu0 %v63
    %108 = vmatprep.subr.mxu0 0.0
    %109 = vmatpush1.msra.mxu0 %v62
    %110 = vmatprep.subr.mxu0 0.0
    %111 = vmatpush1.msra.mxu0 %v61
    %112 = vmatprep.subr.mxu0 0.0
    %113 = vmatpush2.msra.mxu0 0.0
    %114 = vmatprep.subr.mxu0 0.0
    %115 = vmatpush2.msra.mxu0 0.0
    %116 = vmatprep.subr.mxu0 0.0
    %117 = vmatpush2.msra.mxu0 0.0
    %118 = vmatprep.subr.mxu0 0.0
    %119 = vmatpush2.msra.mxu0 0.0
    %120 = vmatprep.subr.mxu0 0.0
    %121 = vmatpush2.msra.mxu0 0.0
    %122 = vmatprep.subr.mxu0 0.0
    %123 = vmatpush2.msra.mxu0 0.0
    %124 = vmatprep.subr.mxu0 0.0
    %125 = vmatpush2.msra.mxu0 0.0
    %126 = vmatprep.subr.mxu0 0.0
    %127 = vmatpush2.msra.mxu0 0.0
    %128 = vmatprep.subr.mxu0 0.0
    %129 = vmatpush2.msra.mxu0 0.0
    %130 = vmatprep.subr.mxu0 0.0
    %131 = vmatpush2.msra.mxu0 0.0
    %132 = vmatprep.subr.mxu0 0.0
    %133 = vmatpush2.msra.mxu0 0.0
    %134 = vmatprep.subr.mxu0 0.0
    %135 = vmatpush2.msra.mxu0 0.0
    %136 = vmatprep.subr.mxu0 0.0
    %137 = vmatpush2.msra.mxu0 0.0
    %138 = vmatprep.subr.mxu0 0.0
    %139 = vmatpush2.msra.mxu0 0.0
    %140 = vmatprep.subr.mxu0 0.0
    %141 = vmatpush2.msra.mxu0 0.0
    %142 = vmatprep.subr.mxu0 0.0
    %143 = vmatpush2.msra.mxu0 0.0
    %144 = vmatprep.mubr.f32.mxu0 0.0
    %145 = vmatmul.mubr.f32.gmra.mxu0 %v78
    %v146 = vpop.f32.mrf.mxu0
    %v147 = vadd.f32 %v74, %v146
    %v148 = vpop.f32.mrf.mxu0
    %149 = vdwg.mxu0
    %v150 = vtanh.pop %v147
    %v151 = vld [vmem:[#allocation7] sm:$0xff]
    %v152 = vld [vmem:[#allocation7 + $0x8] sm:$0xff]
    %v153 = vld [vmem:[#allocation7 + $0x10] sm:$0xff]
    %v154 = vld [vmem:[#allocation7 + $0x18] sm:$0xff]
    %v155 = vld [vmem:[#allocation7 + $0x20] sm:$0xff]
    %v156 = vld [vmem:[#allocation7 + $0x28] sm:$0xff]
    %v157 = vld [vmem:[#allocation7 + $0x30] sm:$0xff]
    %v158 = vld [vmem:[#allocation7 + $0x38] sm:$0xff]
    %v159 = vld [vmem:[#allocation7 + $0x40] sm:$0xff]
    %v160 = vld [vmem:[#allocation7 + $0x48] sm:$0xff]
    %v161 = vld [vmem:[#allocation7 + $0x50] sm:$0xff]
    %v162 = vld [vmem:[#allocation7 + $0x58] sm:$0xff]
    %v163 = vld [vmem:[#allocation7 + $0x60] sm:$0xff]
    %v164 = vld [vmem:[#allocation7 + $0x68] sm:$0xff]
    %v165 = vld [vmem:[#allocation7 + $0x70] sm:$0xff]
    %v166 = vld [vmem:[#allocation7 + $0x78] sm:$0xff]
    %v167 = vld [vmem:[%s4] sm:$0x1]
    %v169 = vlaneseq
    %v170 = vshrl.u32 %v169, 7
    %v171 = vsub.s32 0, %v170
    %v172 = vrot.slane %v167, %v171
    %174 = vmatprep.subr.mxu0 0.0
    %175 = vmatpush1.msra.mxu0 %v166
    %176 = vmatprep.subr.mxu0 0.0
    %177 = vmatpush1.msra.mxu0 %v165
    %178 = vmatprep.subr.mxu0 0.0
    %179 = vmatpush1.msra.mxu0 %v164
    %180 = vmatprep.subr.mxu0 0.0
    %181 = vmatpush1.msra.mxu0 %v163
    %182 = vmatprep.subr.mxu0 0.0
    %183 = vmatpush1.msra.mxu0 %v162
    %184 = vmatprep.subr.mxu0 0.0
    %185 = vmatpush1.msra.mxu0 %v161
    %186 = vmatprep.subr.mxu0 0.0
    %187 = vmatpush1.msra.mxu0 %v160
    %188 = vmatprep.subr.mxu0 0.0
    %189 = vmatpush1.msra.mxu0 %v159
    %190 = vmatprep.subr.mxu0 0.0
    %191 = vmatpush1.msra.mxu0 %v158
    %192 = vmatprep.subr.mxu0 0.0
    %193 = vmatpush1.msra.mxu0 %v157
    %194 = vmatprep.subr.mxu0 0.0
    %195 = vmatpush1.msra.mxu0 %v156
    %196 = vmatprep.subr.mxu0 0.0
    %197 = vmatpush1.msra.mxu0 %v155
    %198 = vmatprep.subr.mxu0 0.0
    %199 = vmatpush1.msra.mxu0 %v154
    %200 = vmatprep.subr.mxu0 0.0
    %201 = vmatpush1.msra.mxu0 %v153
    %202 = vmatprep.subr.mxu0 0.0
    %203 = vmatpush1.msra.mxu0 %v152
    %204 = vmatprep.subr.mxu0 0.0
    %205 = vmatpush1.msra.mxu0 %v151
    %206 = vmatprep.subr.mxu0 0.0
    %207 = vmatpush2.msra.mxu0 0.0
    %208 = vmatprep.subr.mxu0 0.0
    %209 = vmatpush2.msra.mxu0 0.0
    %210 = vmatprep.subr.mxu0 0.0
    %211 = vmatpush2.msra.mxu0 0.0
    %212 = vmatprep.subr.mxu0 0.0
    %213 = vmatpush2.msra.mxu0 0.0
    %214 = vmatprep.subr.mxu0 0.0
    %215 = vmatpush2.msra.mxu0 0.0
    %216 = vmatprep.subr.mxu0 0.0
    %217 = vmatpush2.msra.mxu0 0.0
    %218 = vmatprep.subr.mxu0 0.0
    %219 = vmatpush2.msra.mxu0 0.0
    %220 = vmatprep.subr.mxu0 0.0
    %221 = vmatpush2.msra.mxu0 0.0
    %222 = vmatprep.subr.mxu0 0.0
    %223 = vmatpush2.msra.mxu0 0.0
    %224 = vmatprep.subr.mxu0 0.0
    %225 = vmatpush2.msra.mxu0 0.0
    %226 = vmatprep.subr.mxu0 0.0
    %227 = vmatpush2.msra.mxu0 0.0
    %228 = vmatprep.subr.mxu0 0.0
    %229 = vmatpush2.msra.mxu0 0.0
    %230 = vmatprep.subr.mxu0 0.0
    %231 = vmatpush2.msra.mxu0 0.0
    %232 = vmatprep.subr.mxu0 0.0
    %233 = vmatpush2.msra.mxu0 0.0
    %234 = vmatprep.subr.mxu0 0.0
    %235 = vmatpush2.msra.mxu0 0.0
    %236 = vmatprep.subr.mxu0 0.0
    %237 = vmatpush2.msra.mxu0 0.0
    %238 = vmatprep.mubr.f32.mxu0 0.0
    %239 = vmatmul.mubr.f32.gmra.mxu0 %v150
    %v240 = vpop.f32.mrf.mxu0
    %v241 = vadd.f32 %v172, %v240
    %v242 = vpop.f32.mrf.mxu0
    %243 = vdwg.mxu0
    %vm244 = vcmask 1041408
    %v245 = vsel %vm244, %v241, -inf
    %246 = vmax.xlane.f32.xlu0 %v245
    %v247 = vpop.xlane.xlu0 %246
    %v248 = vsub.f32 %v241, %v247
    %v249 = vmul.f32 %v248, 1.442695
    %v250 = vpow.pop %v249
    %v251 = vsel %vm244, %v250, 0.0
    %252 = vadd.xlane.f32.xlu0 %v251
    %v253 = vpop.xlane.xlu0 %252
    %v254 = vrcp.pop %v253
    %v255 = vmul.f32 %v253, %v254
    %v256 = vsub.f32 2.0, %v255
    %v257 = vmul.f32 %v254, %v256
    %v258 = vmul.f32 %v250, %v257
    %259 = vst [vmem:[#allocation8] sm:$0x3] %v258
    // Predicated region
    $region34: #{tpu_custom_call.1} parent=1 // pred_check
      _
    $region35: #{tpu_custom_call.1} parent=1 // pred_check_branch
      %261 = sbr.rel (0) target = $region37
    $region36: #{tpu_custom_call.1} parent=1 // pred_region
      %s263 = ssub.s32 32, 32
      %264 = vsyncadd [#allocation4], %s263
      %s266 = sshll.u32 [#allocation8], 4
      %s267 = int_to_ptr.vmem [resolvable:$true] %s266
      %269 = dma.vmem_to_hbm [thread:$0]  %s267, 32, %s5, [#allocation4]
    $region37: #{tpu_custom_call.1} parent=1 // pred_fallthru
      _
    // Predicated region
    $region38: #{tpu_custom_call.1} parent=1 // pred_check
      _
    $region39: #{tpu_custom_call.1} parent=1 // pred_check_branch
      %271 = sbr.rel (0) target = $region41
    $region40: #{tpu_custom_call.1} parent=1 // pred_region
      %272 = dma.done [#allocation4], 32
    $region41: #{tpu_custom_call.1} parent=1 // pred_fallthru
      _
    %273 = vsyncpa [#allocation3], 1
    %274 = vsyncpa [#allocation6], 1
    %275 = vsyncpa [#allocation4], 1

</llo_original>
